<compile_context>
chip_gen: v7x
topology: tpu7x:2x2x1
jax: 0.10.0
libtpu: 0.0.40
codegen_flags: <defaults>
</compile_context>

<pallas_src>
import functools

import jax
import jax.numpy as jnp
from jax.experimental import pallas as pl
from jax.experimental.pallas import tpu as pltpu


def _round_up(x: int, m: int) -> int:
    return ((x + m - 1) // m) * m


def _policy_mlp_kernel(x_ref, w1_ref, b1_ref, w2_ref, b2_ref, o_ref):
    # h = relu(x @ W1 + b1), accumulate in f32 on the MXU.
    h = jnp.dot(x_ref[...], w1_ref[...], preferred_element_type=jnp.float32)
    h = jnp.maximum(h + b1_ref[...], 0.0)                  # (TB, Hp) + (1, Hp), f32
    # y = h @ W2 + b2 (cast h back to the MXU compute dtype, accumulate f32).
    y = jnp.dot(h.astype(w2_ref.dtype), w2_ref[...],
                preferred_element_type=jnp.float32)
    o_ref[...] = (y + b2_ref[...]).astype(o_ref.dtype)


def prepare_policy_params(w1, b1, w2, b2, *, compute_dtype=jnp.bfloat16):
    """Pad/cast the parameters ONCE (hoisted out of the per-call forward path).

    Hidden/output dims are zero-padded to multiples of 128 (lane-dense output,
    full MXU columns); the contraction dim (input_dim) is left unpadded.  Zero
    padding is mathematically inert (zero weight rows/cols, relu(0)=0).
    """
    in_dim, hidden = w1.shape
    out_dim = w2.shape[1]
    hid_p = _round_up(hidden, 128)
    out_p = _round_up(out_dim, 128)

    w1p = jnp.pad(w1.astype(compute_dtype), ((0, 0), (0, hid_p - hidden)))
    b1p = jnp.pad(b1.reshape(1, hidden).astype(jnp.float32),
                  ((0, 0), (0, hid_p - hidden)))
    w2p = jnp.pad(w2.astype(compute_dtype),
                  ((0, hid_p - hidden), (0, out_p - out_dim)))
    b2p = jnp.pad(b2.reshape(1, out_dim).astype(jnp.float32),
                  ((0, 0), (0, out_p - out_dim)))
    return w1p, b1p, w2p, b2p


def _choose_batch_tile(batch: int, block_batch: int) -> int:
    # Requested tile, capped to the (sublane-rounded) batch.
    tb = min(block_batch, _round_up(batch, 8))
    # Guarantee >= 2 grid steps when the batch permits so v7x's two TensorCores
    # both get work along the "parallel" batch axis.
    if batch >= 16:
        tb = min(tb, _round_up((batch + 1) // 2, 8))
    # Snap large tiles to MXU-native M multiples (256 on v6e/v7x, 128 on v5e).
    if tb >= 256:
        tb -= tb % 256
    elif tb >= 128:
        tb -= tb % 128
    return _round_up(tb, 8)


@functools.partial(jax.jit, static_argnames=("out_dim", "block_batch"))
def policy_network_forward(x, w1p, b1p, w2p, b2p, *, out_dim, block_batch=512):
    """Fused forward pass: relu(x @ W1 + b1) @ W2 + b2 (params pre-padded)."""
    batch, in_dim = x.shape
    hid_p = w1p.shape[1]
    out_p = w2p.shape[1]
    out_dtype = x.dtype
    compute_dtype = w1p.dtype

    tb = _choose_batch_tile(batch, block_batch)
    batch_p = _round_up(batch, tb)
    grid = (batch_p // tb,)

    # Only the activation is padded per call (single fused pad op, batch rows
    # only); padded rows are sliced off after the call.
    xp = jnp.pad(x.astype(compute_dtype), ((0, batch_p - batch), (0, 0)))

    # VMEM budget: single-buffered resident weights/biases + double-buffered
    # x/out tiles + f32 intermediates, with 2x headroom (floor at the 32 MiB
    # scoped default, cap below physical VMEM on every generation).
    cbytes = jnp.dtype(compute_dtype).itemsize
    obytes = jnp.dtype(out_dtype).itemsize
    est = (2 * tb * in_dim * cbytes            # x tile, double-buffered
           + 2 * tb * out_p * obytes           # out tile, double-buffered
           + (in_dim * hid_p + hid_p * out_p) * cbytes   # resident weights (1 buf)
           + (hid_p + out_p) * 4               # resident f32 biases
           + tb * (hid_p + out_p) * 4)         # f32 intermediates
    vmem_limit = int(min(100 * 1024 * 1024, max(32 * 1024 * 1024, 2 * est)))

    resident = pl.Buffered(1)  # constant index_map -> no need to double-buffer
    out_padded = pl.pallas_call(
        _policy_mlp_kernel,
        out_shape=jax.ShapeDtypeStruct((batch_p, out_p), out_dtype),
        grid=grid,
        in_specs=[
            pl.BlockSpec((tb, in_dim), lambda i: (i, 0)),                        # x tile
            pl.BlockSpec((in_dim, hid_p), lambda i: (0, 0), pipeline_mode=resident),  # W1
            pl.BlockSpec((1, hid_p), lambda i: (0, 0), pipeline_mode=resident),       # b1
            pl.BlockSpec((hid_p, out_p), lambda i: (0, 0), pipeline_mode=resident),   # W2
            pl.BlockSpec((1, out_p), lambda i: (0, 0), pipeline_mode=resident),       # b2
        ],
        out_specs=pl.BlockSpec((tb, out_p), lambda i: (i, 0)),
        compiler_params=pltpu.CompilerParams(
            dimension_semantics=("parallel",),
            vmem_limit_bytes=vmem_limit,
        ),
    )(xp, w1p, b1p, w2p, b2p)

    return out_padded[:batch, :out_dim]


def init_policy_params(key, input_dim, output_dim, hidden_size, dtype=jnp.float32):
    """Deterministic init mimicking torch.nn.Linear defaults (U(-1/sqrt(fan_in), +))."""
    k1, k2, k3, k4 = jax.random.split(key, 4)
    bound1 = 1.0 / (input_dim ** 0.5)
    bound2 = 1.0 / (hidden_size ** 0.5)
    w1 = jax.random.uniform(k1, (input_dim, hidden_size), dtype, -bound1, bound1)
    b1 = jax.random.uniform(k2, (1, hidden_size), dtype, -bound1, bound1)
    w2 = jax.random.uniform(k3, (hidden_size, output_dim), dtype, -bound2, bound2)
    b2 = jax.random.uniform(k4, (1, output_dim), dtype, -bound2, bound2)
    return w1, b1, w2, b2


def _reference_f32(x, w1, b1, w2, b2):
    return jnp.maximum(x @ w1 + b1, 0.0) @ w2 + b2


def _reference_bf16(x, w1, b1, w2, b2):
    # Same numerics as the kernel: bf16 MXU inputs, f32 accumulation/bias/relu.
    h = jnp.dot(x.astype(jnp.bfloat16), w1.astype(jnp.bfloat16),
                preferred_element_type=jnp.float32) + b1.astype(jnp.float32)
    h = jnp.maximum(h, 0.0)
    y = jnp.dot(h.astype(jnp.bfloat16), w2.astype(jnp.bfloat16),
                preferred_element_type=jnp.float32) + b2.astype(jnp.float32)
    return y


if __name__ == "__main__":
    # Small shapes consistent with the module's forward: x [batch, input_dim].
    batch, input_dim, hidden_size, output_dim = 64, 32, 64, 16

    key = jax.random.PRNGKey(0)
    kx, kp = jax.random.split(key)
    x = jax.random.normal(kx, (batch, input_dim), jnp.float32)
    w1, b1, w2, b2 = init_policy_params(kp, input_dim, output_dim, hidden_size)

    # Pad/cast parameters once (out of the per-call path).
    w1p, b1p, w2p, b2p = prepare_policy_params(w1, b1, w2, b2)

    # batch=64 -> tile chooser picks tb=32, grid=(2,): the batch-tiled pipeline
    # (and the >=2-step megacore guarantee) is exercised.
    out = policy_network_forward(x, w1p, b1p, w2p, b2p, out_dim=output_dim)
    out = jax.block_until_ready(out)
    assert out.shape == (batch, output_dim)
    assert out.dtype == x.dtype

    # Tight check vs. a pure-JAX path with identical bf16/f32 numerics.
    ref_bf16 = _reference_bf16(x, w1, b1, w2, b2)
    assert jnp.allclose(out, ref_bf16, atol=1e-3, rtol=1e-2)

    # Loose check vs. the full-f32 PyTorch-equivalent semantics.
    ref_f32 = _reference_f32(x, w1, b1, w2, b2)
    assert jnp.allclose(out, ref_f32, atol=5e-2, rtol=5e-2)

    print("KERNEL_OK")
</pallas_src>

<mosaic_0001>
module attributes {stable_mosaic.version = 11 : i64} {
  func.func @_policy_mlp_kernel(%arg0: i32, %arg1: memref<32x32xbf16, #tpu.memory_space<vmem>>, %arg2: memref<32x128xbf16, #tpu.memory_space<vmem>>, %arg3: memref<1x128xf32, #tpu.memory_space<vmem>>, %arg4: memref<128x128xbf16, #tpu.memory_space<vmem>>, %arg5: memref<1x128xf32, #tpu.memory_space<vmem>>, %arg6: memref<32x128xf32, #tpu.memory_space<vmem>>) attributes {dimension_semantics = [#tpu.dimension_semantics<parallel>], iteration_bounds = array<i64: 2>, scalar_prefetch = 0 : i64, scratch_operands = 0 : i64, tpu.core_type = #tpu.core_type<tc>, window_params = [{transform_indices = @transform_0, window_bounds = array<i64: 32, 32>}, {pipeline_mode = #tpu.pipeline_mode<synchronous>, transform_indices = @transform_1, window_bounds = array<i64: 32, 128>}, {pipeline_mode = #tpu.pipeline_mode<synchronous>, transform_indices = @transform_2, window_bounds = array<i64: 1, 128>}, {pipeline_mode = #tpu.pipeline_mode<synchronous>, transform_indices = @transform_3, window_bounds = array<i64: 128, 128>}, {pipeline_mode = #tpu.pipeline_mode<synchronous>, transform_indices = @transform_4, window_bounds = array<i64: 1, 128>}, {transform_indices = @transform_5, window_bounds = array<i64: 32, 128>}]} {
    %c0 = arith.constant 0 : index
    %c0_0 = arith.constant 0 : index
    %0 = vector.load %arg1[%c0, %c0_0] : memref<32x32xbf16, #tpu.memory_space<vmem>>, vector<32x32xbf16>
    %c0_1 = arith.constant 0 : index
    %c0_2 = arith.constant 0 : index
    %1 = vector.load %arg2[%c0_1, %c0_2] : memref<32x128xbf16, #tpu.memory_space<vmem>>, vector<32x128xbf16>
    %cst = arith.constant dense<0.000000e+00> : vector<32x128xf32>
    %2 = tpu.matmul %0, %1, %cst {dimension_numbers = #tpu.dot_dimension_numbers<[1], [0], [0], [1], [0, 0, 1, 1], [], []>} : vector<32x32xbf16>, vector<32x128xbf16>, vector<32x128xf32> -> vector<32x128xf32>
    %c0_3 = arith.constant 0 : index
    %c0_4 = arith.constant 0 : index
    %3 = vector.load %arg3[%c0_3, %c0_4] : memref<1x128xf32, #tpu.memory_space<vmem>>, vector<1x128xf32>
    %4 = vector.broadcast %3 : vector<1x128xf32> to vector<32x128xf32>
    %5 = arith.addf %2, %4 : vector<32x128xf32>
    %cst_5 = arith.constant 0.000000e+00 : f32
    %6 = vector.broadcast %cst_5 : f32 to vector<32x128xf32>
    %7 = arith.maximumf %5, %6 : vector<32x128xf32>
    %8 = arith.truncf %7 : vector<32x128xf32> to vector<32x128xbf16>
    %c0_6 = arith.constant 0 : index
    %c0_7 = arith.constant 0 : index
    %9 = vector.load %arg4[%c0_6, %c0_7] : memref<128x128xbf16, #tpu.memory_space<vmem>>, vector<128x128xbf16>
    %cst_8 = arith.constant dense<0.000000e+00> : vector<32x128xf32>
    %10 = tpu.matmul %8, %9, %cst_8 {dimension_numbers = #tpu.dot_dimension_numbers<[1], [0], [0], [1], [0, 0, 1, 1], [], []>} : vector<32x128xbf16>, vector<128x128xbf16>, vector<32x128xf32> -> vector<32x128xf32>
    %c0_9 = arith.constant 0 : index
    %c0_10 = arith.constant 0 : index
    %11 = vector.load %arg5[%c0_9, %c0_10] : memref<1x128xf32, #tpu.memory_space<vmem>>, vector<1x128xf32>
    %12 = vector.broadcast %11 : vector<1x128xf32> to vector<32x128xf32>
    %13 = arith.addf %10, %12 : vector<32x128xf32>
    %c0_11 = arith.constant 0 : index
    %c0_12 = arith.constant 0 : index
    %14 = vector.load %arg6[%c0_11, %c0_12] : memref<32x128xf32, #tpu.memory_space<vmem>>, vector<32x128xf32>
    tpu.vector_store %arg6[%c0_11, %c0_12], %13 {strides = array<i32>} : memref<32x128xf32, #tpu.memory_space<vmem>>, vector<32x128xf32>,
    return
  }
  func.func @transform_0(%arg0: i32) -> (i32, i32) {
    %c0_i32 = arith.constant 0 : i32
    %c0_i32_0 = arith.constant 0 : i32
    return %arg0, %c0_i32 : i32, i32
  }
  func.func @transform_1(%arg0: i32) -> (i32, i32) {
    %c0_i32 = arith.constant 0 : i32
    %c0_i32_0 = arith.constant 0 : i32
    %c0_i32_1 = arith.constant 0 : i32
    return %c0_i32, %c0_i32_0 : i32, i32
  }
  func.func @transform_2(%arg0: i32) -> (i32, i32) {
    %c0_i32 = arith.constant 0 : i32
    %c0_i32_0 = arith.constant 0 : i32
    %c0_i32_1 = arith.constant 0 : i32
    return %c0_i32, %c0_i32_0 : i32, i32
  }
  func.func @transform_3(%arg0: i32) -> (i32, i32) {
    %c0_i32 = arith.constant 0 : i32
    %c0_i32_0 = arith.constant 0 : i32
    %c0_i32_1 = arith.constant 0 : i32
    return %c0_i32, %c0_i32_0 : i32, i32
  }
  func.func @transform_4(%arg0: i32) -> (i32, i32) {
    %c0_i32 = arith.constant 0 : i32
    %c0_i32_0 = arith.constant 0 : i32
    %c0_i32_1 = arith.constant 0 : i32
    return %c0_i32, %c0_i32_0 : i32, i32
  }
  func.func @transform_5(%arg0: i32) -> (i32, i32) {
    %c0_i32 = arith.constant 0 : i32
    %c0_i32_0 = arith.constant 0 : i32
    return %arg0, %c0_i32 : i32, i32
  }
}

</mosaic_0001>

<llo_original>
// kernel: policy_network_forward.1
$region0: #{policy_network_forward.1}
  #allocation0 [shape = 'u32[]', space=smem, size = 0x4, offset = 0x4, fixed_abs, tag = 'smem constant byte address 0x4 - core index']
  #allocation1 [shape = 'u32[144,128]{1,0:T(1,128)}', space=vmem, size = 0x12000, scoped, tag = 'internal scratch']
  %s0 = inlined_call_operand.vmem [shape: bf16[64,32], index: 0, kind: input, shape index: {}]
  %s1 = inlined_call_operand.vmem [shape: bf16[32,128], index: 1, kind: input, shape index: {}]
  %s2 = inlined_call_operand.vmem [shape: f32[1,128], index: 2, kind: input, shape index: {}]
  %s3 = inlined_call_operand.vmem [shape: bf16[128,128], index: 3, kind: input, shape index: {}]
  %s4 = inlined_call_operand.vmem [shape: f32[1,128], index: 4, kind: input, shape index: {}]
  %s5 = inlined_call_operand.vmem [shape: f32[64,128], index: 5, kind: output, shape index: {}]
  %s6 = sld [smem:[#allocation0]]
  $region53: #{policy_network_forward.1} parent=0
    _
  %s8 = ssub.s32 1, %s6
  %s9 = scalar_select 0, %s8, %s6
  loop: start=0, step=1, limit=4
  $region2: #{policy_network_forward.1} parent=0 // loop_pre_header
    _
  $region3: #{policy_network_forward.1} parent=0 // loop_header
    %s11 = sphi 0, %s15
    %p12 = scmp.ge.s32.totalorder %s11, 4
    %s21 = sphi 0, %s23
    %s24 = sphi 0, %s21
    %s25 = sphi 0, %s24
    %s41 = sphi 0, %s25
    %s45 = sphi 0, %s45
    %s47 = sphi 0, %s45
    %s48 = sphi 0, %s47
    %s62 = sphi 0, %s48
    %s66 = sphi 0, %s66
    %s68 = sphi 0, %s66
    %s69 = sphi 0, %s68
    %s83 = sphi 0, %s69
    %s87 = sphi 0, %s87
    %s89 = sphi 0, %s87
    %s90 = sphi 0, %s89
    %s104 = sphi 0, %s90
    %s108 = sphi 0, %s108
    %s110 = sphi 0, %s108
    %s111 = sphi 0, %s110
    %s125 = sphi 0, %s111
    %s131 = sphi 0, %s133
    %s134 = sphi 0, %s131
    %s135 = sphi 0, %s134
    %s151 = sphi 0, %s135
  $region4: #{policy_network_forward.1} parent=0 // loop_header_branch
    %14 = sbr.rel (%p12) target = $region8
  $region5: #{policy_network_forward.1} parent=0 // loop_body
    %s16 = ssub.s32 %s11, 1
    %s17 = ssub.s32 %s11, 2
    %s18 = sadd.s32 %s11, 1
    %s19 = ssub.s32 %s11, %s18
    %p20 = scmp.eq.s32.totalorder %s19, 0
    %s22 = sadd.s32 %s21, 1
    %s23 = scalar_select %p20, %s21, %s22
    %p26 = pneg %p20
    %p27 = scmp.eq.s32.totalorder %s11, 1
    %p28 = por %p26, %p27
    %p29 = scmp.ne.s32.totalorder %s21, %s24
    %p30 = scmp.eq.s32.totalorder %s11, 0
    %p31 = por %p29, %p30
    %p32 = scmp.ne.s32.totalorder %s21, %s24
    %p33 = scmp.eq.s32.totalorder %s16, 1
    %p34 = por %p32, %p33
    %p35 = scmp.ne.s32.totalorder %s24, %s25
    %p36 = scmp.eq.s32.totalorder %s16, 0
    %p37 = por %p35, %p36
    %p38 = scmp.ne.s32.totalorder %s24, %s25
    %p39 = scmp.eq.s32.totalorder %s17, 1
    %p40 = por %p38, %p39
    %p42 = scmp.ne.s32.totalorder %s25, %s41
    %p43 = scmp.eq.s32.totalorder %s17, 0
    %p44 = por %p42, %p43
    %s46 = sadd.s32 %s45, 1
    %p49 = scmp.eq.s32.totalorder %s11, 1
    %p50 = scmp.ne.s32.totalorder %s45, %s47
    %p51 = scmp.eq.s32.totalorder %s11, 0
    %p52 = por %p50, %p51
    %p53 = scmp.ne.s32.totalorder %s45, %s47
    %p54 = scmp.eq.s32.totalorder %s16, 1
    %p55 = por %p53, %p54
    %p56 = scmp.ne.s32.totalorder %s47, %s48
    %p57 = scmp.eq.s32.totalorder %s16, 0
    %p58 = por %p56, %p57
    %p59 = scmp.ne.s32.totalorder %s47, %s48
    %p60 = scmp.eq.s32.totalorder %s17, 1
    %p61 = por %p59, %p60
    %p63 = scmp.ne.s32.totalorder %s48, %s62
    %p64 = scmp.eq.s32.totalorder %s17, 0
    %p65 = por %p63, %p64
    %s67 = sadd.s32 %s66, 1
    %p70 = scmp.eq.s32.totalorder %s11, 1
    %p71 = scmp.ne.s32.totalorder %s66, %s68
    %p72 = scmp.eq.s32.totalorder %s11, 0
    %p73 = por %p71, %p72
    %p74 = scmp.ne.s32.totalorder %s66, %s68
    %p75 = scmp.eq.s32.totalorder %s16, 1
    %p76 = por %p74, %p75
    %p77 = scmp.ne.s32.totalorder %s68, %s69
    %p78 = scmp.eq.s32.totalorder %s16, 0
    %p79 = por %p77, %p78
    %p80 = scmp.ne.s32.totalorder %s68, %s69
    %p81 = scmp.eq.s32.totalorder %s17, 1
    %p82 = por %p80, %p81
    %p84 = scmp.ne.s32.totalorder %s69, %s83
    %p85 = scmp.eq.s32.totalorder %s17, 0
    %p86 = por %p84, %p85
    %s88 = sadd.s32 %s87, 1
    %p91 = scmp.eq.s32.totalorder %s11, 1
    %p92 = scmp.ne.s32.totalorder %s87, %s89
    %p93 = scmp.eq.s32.totalorder %s11, 0
    %p94 = por %p92, %p93
    %p95 = scmp.ne.s32.totalorder %s87, %s89
    %p96 = scmp.eq.s32.totalorder %s16, 1
    %p97 = por %p95, %p96
    %p98 = scmp.ne.s32.totalorder %s89, %s90
    %p99 = scmp.eq.s32.totalorder %s16, 0
    %p100 = por %p98, %p99
    %p101 = scmp.ne.s32.totalorder %s89, %s90
    %p102 = scmp.eq.s32.totalorder %s17, 1
    %p103 = por %p101, %p102
    %p105 = scmp.ne.s32.totalorder %s90, %s104
    %p106 = scmp.eq.s32.totalorder %s17, 0
    %p107 = por %p105, %p106
    %s109 = sadd.s32 %s108, 1
    %p112 = scmp.eq.s32.totalorder %s11, 1
    %p113 = scmp.ne.s32.totalorder %s108, %s110
    %p114 = scmp.eq.s32.totalorder %s11, 0
    %p115 = por %p113, %p114
    %p116 = scmp.ne.s32.totalorder %s108, %s110
    %p117 = scmp.eq.s32.totalorder %s16, 1
    %p118 = por %p116, %p117
    %p119 = scmp.ne.s32.totalorder %s110, %s111
    %p120 = scmp.eq.s32.totalorder %s16, 0
    %p121 = por %p119, %p120
    %p122 = scmp.ne.s32.totalorder %s110, %s111
    %p123 = scmp.eq.s32.totalorder %s17, 1
    %p124 = por %p122, %p123
    %p126 = scmp.ne.s32.totalorder %s111, %s125
    %p127 = scmp.eq.s32.totalorder %s17, 0
    %p128 = por %p126, %p127
    %s129 = ssub.s32 %s11, %s18
    %p130 = scmp.eq.s32.totalorder %s129, 0
    %s132 = sadd.s32 %s131, 1
    %s133 = scalar_select %p130, %s131, %s132
    %p136 = pneg %p130
    %p137 = scmp.eq.s32.totalorder %s11, 1
    %p138 = por %p136, %p137
    %p139 = scmp.ne.s32.totalorder %s131, %s134
    %p140 = scmp.eq.s32.totalorder %s11, 0
    %p141 = por %p139, %p140
    %p142 = scmp.ne.s32.totalorder %s131, %s134
    %p143 = scmp.eq.s32.totalorder %s16, 1
    %p144 = por %p142, %p143
    %p145 = scmp.ne.s32.totalorder %s134, %s135
    %p146 = scmp.eq.s32.totalorder %s16, 0
    %p147 = por %p145, %p146
    %p148 = scmp.ne.s32.totalorder %s134, %s135
    %p149 = scmp.eq.s32.totalorder %s17, 1
    %p150 = por %p148, %p149
    %p152 = scmp.ne.s32.totalorder %s135, %s151
    %p153 = scmp.eq.s32.totalorder %s17, 0
    %p154 = por %p152, %p153
    %p155 = scmp.le.s32.totalorder 1, %s11
    %p156 = scmp.lt.s32.totalorder %s11, 3
    %p157 = pnand %p155, %p156
    %p158 = pneg %p157
    // Predicated region
    $region9: #{policy_network_forward.1} parent=5 // pred_check
      _
    $region10: #{policy_network_forward.1} parent=5 // pred_check_branch
      %160 = sbr.rel (%p157) target = $region12
    $region11: #{policy_network_forward.1} parent=5 // pred_region
      %s161 = ssub.s32 %s11, 1
      // Predicated region
      $region13: #{policy_network_forward.1} parent=11 // pred_check
        %p162 = pneg %p58
      $region14: #{policy_network_forward.1} parent=11 // pred_check_branch
        %164 = sbr.rel (%p162) target = $region16
      $region15: #{policy_network_forward.1} parent=11 // pred_region
        _
      $region16: #{policy_network_forward.1} parent=11 // pred_fallthru
        _
      // Predicated region
      $region17: #{policy_network_forward.1} parent=11 // pred_check
        %p165 = pneg %p79
      $region18: #{policy_network_forward.1} parent=11 // pred_check_branch
        %167 = sbr.rel (%p165) target = $region20
      $region19: #{policy_network_forward.1} parent=11 // pred_region
        _
      $region20: #{policy_network_forward.1} parent=11 // pred_fallthru
        _
      // Predicated region
      $region21: #{policy_network_forward.1} parent=11 // pred_check
        %p168 = pneg %p100
      $region22: #{policy_network_forward.1} parent=11 // pred_check_branch
        %170 = sbr.rel (%p168) target = $region24
      $region23: #{policy_network_forward.1} parent=11 // pred_region
        _
      $region24: #{policy_network_forward.1} parent=11 // pred_fallthru
        _
      // Predicated region
      $region25: #{policy_network_forward.1} parent=11 // pred_check
        %p171 = pneg %p121
      $region26: #{policy_network_forward.1} parent=11 // pred_check_branch
        %173 = sbr.rel (%p171) target = $region28
      $region27: #{policy_network_forward.1} parent=11 // pred_region
        _
      $region28: #{policy_network_forward.1} parent=11 // pred_fallthru
        _
    $region12: #{policy_network_forward.1} parent=5 // pred_fallthru
      _
    %p174 = scmp.lt.s32.totalorder %s11, 2
    // Predicated region
    $region29: #{policy_network_forward.1} parent=5 // pred_check
      %p175 = pneg %p174
    $region30: #{policy_network_forward.1} parent=5 // pred_check_branch
      %177 = sbr.rel (%p175) target = $region32
    $region31: #{policy_network_forward.1} parent=5 // pred_region
      // Predicated region
      $region33: #{policy_network_forward.1} parent=31 // pred_check
        %p178 = pneg %p31
      $region34: #{policy_network_forward.1} parent=31 // pred_check_branch
        %180 = sbr.rel (%p178) target = $region36
      $region35: #{policy_network_forward.1} parent=31 // pred_region
        %s181 = smul.u32 4, %s11
        %p182 = scmp.lt.s32.totalorder %s181, 7
        %s183 = scalar_select %p182, %s181, 7
        %s184 = smul.addr %s183, 4
        %s185 = scalar_lea.vmem %s0, %s184
        %s186 = smul.u32 4, %s11
      $region36: #{policy_network_forward.1} parent=31 // pred_fallthru
        _
    $region32: #{policy_network_forward.1} parent=5 // pred_fallthru
      _
    %p187 = scmp.le.s32.totalorder 1, %s11
    %p188 = scmp.lt.s32.totalorder %s11, 3
    %p189 = pnand %p187, %p188
    %p190 = pneg %p189
    // Predicated region
    $region37: #{policy_network_forward.1} parent=5 // pred_check
      _
    $region38: #{policy_network_forward.1} parent=5 // pred_check_branch
      %192 = sbr.rel (%p189) target = $region40
    $region39: #{policy_network_forward.1} parent=5 // pred_region
      %s193 = ssub.s32 %s11, 1
      %s194 = smul.u32 4, %s16
      %p195 = scmp.lt.s32.totalorder %s194, 7
      %s196 = scalar_select %p195, %s194, 7
      %s197 = smul.addr %s196, 4
      %s198 = scalar_lea.vmem %s0, %s197
      %p199 = pneg %p37
      %p200 = pneg %p34
      %p201 = pneg %p58
      %p202 = pneg %p55
      %p203 = pneg %p79
      %p204 = pneg %p76
      %p205 = pneg %p100
      %p206 = pneg %p97
      %p207 = pneg %p121
      %p208 = pneg %p118
      %p209 = pneg %p147
      %p210 = pneg %p144
      %s211 = smul.u32 4, %s16
      %p212 = scmp.lt.s32.totalorder %s211, 7
      %s213 = scalar_select %p212, %s211, 7
      %s214 = smul.addr %s213, 8
      %s215 = scalar_lea.vmem %s5, %s214
      %s216 = smul.u32 4, %s16
      %p217 = scmp.lt.s32.totalorder %s216, 7
      %s218 = scalar_select %p217, %s216, 7
      %s219 = smul.addr %s218, 4
      %s220 = scalar_lea.vmem %s0, %s219
      %s221 = smul.u32 4, %s16
      %s222 = smul.u32 4, %s16
      %p223 = scmp.lt.s32.totalorder %s222, 7
      %s224 = scalar_select %p223, %s222, 7
      %s225 = smul.addr %s224, 8
      %s226 = scalar_lea.vmem %s5, %s225
      %s227 = smul.u32 4, %s16
      %v229 = vld [vmem:[%s220] sm:$0xf]
      %v230 = vld [vmem:[%s220 + $0x4] sm:$0xf]
      %v231 = vld [vmem:[%s220 + $0x8] sm:$0xf]
      %v232 = vld [vmem:[%s220 + $0xc] sm:$0xf]
      %v233 = vld [vmem:[%s1] sm:$0xf]
      %v234 = vld [vmem:[%s1 + $0x4] sm:$0xf]
      %v235 = vld [vmem:[%s1 + $0x8] sm:$0xf]
      %v236 = vld [vmem:[%s1 + $0xc] sm:$0xf]
      %v237 = vld [vmem:[%s2] sm:$0x1]
      %v239 = vlaneseq
      %v240 = vshrl.u32 %v239, 7
      %v241 = vsub.s32 0, %v240
      %v242 = vrot.slane %v237, %v241
      %v248 = vunpack.c.l.b16 %v229
      %v249 = vunpack.c.l.b16 %v230
      %v250 = vunpack.c.l.b16 %v231
      %v251 = vunpack.c.l.b16 %v232
      %v252 = vpack.c.b16 %v249, %v248
      %v253 = vpack.c.b16 %v251, %v250
      %v258 = vunpack.c.l.b16 %v233
      %v259 = vunpack.c.l.b16 %v234
      %v260 = vunpack.c.l.b16 %v235
      %v261 = vunpack.c.l.b16 %v236
      %v262 = vpack.c.b16 %v259, %v258
      %v263 = vpack.c.b16 %v261, %v260
      %vm266 = vcmask 261120
      %v268 = vsel %vm266, %v252, 0
      %v271 = vsel %vm266, %v253, 0
      %273 = vmatprep.subr.bf16.mxu0 0
      %274 = vmatpush1.bf16.msra.mxu0 %v262
      %275 = vmatprep.subr.bf16.mxu0 0
      %276 = vmatpush1.bf16.msra.mxu0 %v263
      %277 = vmatprep.subr.bf16.mxu0 0
      %278 = vmatpush1.bf16.msra.mxu0 0
      %279 = vmatprep.subr.bf16.mxu0 0
      %280 = vmatpush1.bf16.msra.mxu0 0
      %281 = vmatprep.subr.bf16.mxu0 0
      %282 = vmatpush1.bf16.msra.mxu0 0
      %283 = vmatprep.subr.bf16.mxu0 0
      %284 = vmatpush1.bf16.msra.mxu0 0
      %285 = vmatprep.subr.bf16.mxu0 0
      %286 = vmatpush1.bf16.msra.mxu0 0
      %287 = vmatprep.subr.bf16.mxu0 0
      %288 = vmatpush1.bf16.msra.mxu0 0
      %289 = vmatprep.subr.bf16.mxu0 0
      %290 = vmatpush1.bf16.msra.mxu0 0
      %291 = vmatprep.subr.bf16.mxu0 0
      %292 = vmatpush1.bf16.msra.mxu0 0
      %293 = vmatprep.subr.bf16.mxu0 0
      %294 = vmatpush1.bf16.msra.mxu0 0
      %295 = vmatprep.subr.bf16.mxu0 0
      %296 = vmatpush1.bf16.msra.mxu0 0
      %297 = vmatprep.subr.bf16.mxu0 0
      %298 = vmatpush1.bf16.msra.mxu0 0
      %299 = vmatprep.subr.bf16.mxu0 0
      %300 = vmatpush1.bf16.msra.mxu0 0
      %301 = vmatprep.subr.bf16.mxu0 0
      %302 = vmatpush1.bf16.msra.mxu0 0
      %303 = vmatprep.subr.bf16.mxu0 0
      %304 = vmatpush1.bf16.msra.mxu0 0
      %305 = vmatprep.mubr.bf16.mxu0 0
      %306 = vmatmul.mubr.bf16.gmra.mrb[0].mxu0 %v268
      %v307 = vpop.f32.mrb[0].mxu0
      %v308 = vadd.f32 %v242, %v307
      %v309 = vpop.f32.mrb[0].mxu0
      %v310 = vpop.f32.mrb[0].mxu0
      %v311 = vadd.f32 %v242, %v310
      %v312 = vpop.f32.mrb[0].mxu0
      %313 = vmatprep.mubr.bf16.mxu0 0
      %314 = vmatmul.mubr.bf16.gmra.mrb[0].mxu0 %v271
      %v315 = vpop.f32.mrb[0].mxu0
      %v316 = vadd.f32 %v242, %v315
      %v317 = vpop.f32.mrb[0].mxu0
      %v318 = vpop.f32.mrb[0].mxu0
      %v319 = vadd.f32 %v242, %v318
      %v320 = vpop.f32.mrb[0].mxu0
      %321 = vdwg.mxu0
      %v322 = vmax.f32 %v308, 0.0
      %v323 = vmax.f32 %v311, 0.0
      %v324 = vmax.f32 %v316, 0.0
      %v325 = vmax.f32 %v319, 0.0
      %v326 = vpack.c.bf16 %v323, %v322
      %v327 = vpack.c.bf16 %v325, %v324
      %v328 = vld [vmem:[%s3] sm:$0xf]
      %v329 = vld [vmem:[%s3 + $0x4] sm:$0xf]
      %v330 = vld [vmem:[%s3 + $0x8] sm:$0xf]
      %v331 = vld [vmem:[%s3 + $0xc] sm:$0xf]
      %v332 = vld [vmem:[%s3 + $0x10] sm:$0xf]
      %v333 = vld [vmem:[%s3 + $0x14] sm:$0xf]
      %v334 = vld [vmem:[%s3 + $0x18] sm:$0xf]
      %v335 = vld [vmem:[%s3 + $0x1c] sm:$0xf]
      %v336 = vld [vmem:[%s3 + $0x20] sm:$0xf]
      %v337 = vld [vmem:[%s3 + $0x24] sm:$0xf]
      %v338 = vld [vmem:[%s3 + $0x28] sm:$0xf]
      %v339 = vld [vmem:[%s3 + $0x2c] sm:$0xf]
      %v340 = vld [vmem:[%s3 + $0x30] sm:$0xf]
      %v341 = vld [vmem:[%s3 + $0x34] sm:$0xf]
      %v342 = vld [vmem:[%s3 + $0x38] sm:$0xf]
      %v343 = vld [vmem:[%s3 + $0x3c] sm:$0xf]
      %v344 = vld [vmem:[%s4] sm:$0x1]
      %v346 = vlaneseq
      %v347 = vshrl.u32 %v346, 7
      %v348 = vsub.s32 0, %v347
      %v349 = vrot.slane %v344, %v348
      %v367 = vunpack.c.l.b16 %v328
      %v368 = vunpack.c.l.b16 %v329
      %v369 = vunpack.c.l.b16 %v330
      %v370 = vunpack.c.l.b16 %v331
      %v371 = vunpack.c.l.b16 %v332
      %v372 = vunpack.c.l.b16 %v333
      %v373 = vunpack.c.l.b16 %v334
      %v374 = vunpack.c.l.b16 %v335
      %v375 = vunpack.c.l.b16 %v336
      %v376 = vunpack.c.l.b16 %v337
      %v377 = vunpack.c.l.b16 %v338
      %v378 = vunpack.c.l.b16 %v339
      %v379 = vunpack.c.l.b16 %v340
      %v380 = vunpack.c.l.b16 %v341
      %v381 = vunpack.c.l.b16 %v342
      %v382 = vunpack.c.l.b16 %v343
      %v383 = vpack.c.b16 %v368, %v367
      %v384 = vpack.c.b16 %v370, %v369
      %v385 = vpack.c.b16 %v372, %v371
      %v386 = vpack.c.b16 %v374, %v373
      %v387 = vpack.c.b16 %v376, %v375
      %v388 = vpack.c.b16 %v378, %v377
      %v389 = vpack.c.b16 %v380, %v379
      %v390 = vpack.c.b16 %v382, %v381
      %399 = vmatprep.subr.bf16.mxu0 0
      %400 = vmatpush1.bf16.msra.mxu0 %v383
      %401 = vmatprep.subr.bf16.mxu0 0
      %402 = vmatpush1.bf16.msra.mxu0 %v384
      %403 = vmatprep.subr.bf16.mxu0 0
      %404 = vmatpush1.bf16.msra.mxu0 %v385
      %405 = vmatprep.subr.bf16.mxu0 0
      %406 = vmatpush1.bf16.msra.mxu0 %v386
      %407 = vmatprep.subr.bf16.mxu0 0
      %408 = vmatpush1.bf16.msra.mxu0 %v387
      %409 = vmatprep.subr.bf16.mxu0 0
      %410 = vmatpush1.bf16.msra.mxu0 %v388
      %411 = vmatprep.subr.bf16.mxu0 0
      %412 = vmatpush1.bf16.msra.mxu0 %v389
      %413 = vmatprep.subr.bf16.mxu0 0
      %414 = vmatpush1.bf16.msra.mxu0 %v390
      %415 = vmatprep.subr.bf16.mxu0 0
      %416 = vmatpush1.bf16.msra.mxu0 0
      %417 = vmatprep.subr.bf16.mxu0 0
      %418 = vmatpush1.bf16.msra.mxu0 0
      %419 = vmatprep.subr.bf16.mxu0 0
      %420 = vmatpush1.bf16.msra.mxu0 0
      %421 = vmatprep.subr.bf16.mxu0 0
      %422 = vmatpush1.bf16.msra.mxu0 0
      %423 = vmatprep.subr.bf16.mxu0 0
      %424 = vmatpush1.bf16.msra.mxu0 0
      %425 = vmatprep.subr.bf16.mxu0 0
      %426 = vmatpush1.bf16.msra.mxu0 0
      %427 = vmatprep.subr.bf16.mxu0 0
      %428 = vmatpush1.bf16.msra.mxu0 0
      %429 = vmatprep.subr.bf16.mxu0 0
      %430 = vmatpush1.bf16.msra.mxu0 0
      %431 = vmatprep.mubr.bf16.mxu0 0
      %432 = vmatmul.mubr.bf16.gmra.mrb[0].mxu0 %v326
      %v433 = vpop.f32.mrb[0].mxu0
      %v434 = vadd.f32 %v349, %v433
      %v435 = vpop.f32.mrb[0].mxu0
      %v436 = vpop.f32.mrb[0].mxu0
      %v437 = vadd.f32 %v349, %v436
      %v438 = vpop.f32.mrb[0].mxu0
      %439 = vmatprep.mubr.bf16.mxu0 0
      %440 = vmatmul.mubr.bf16.gmra.mrb[0].mxu0 %v327
      %v441 = vpop.f32.mrb[0].mxu0
      %v442 = vadd.f32 %v349, %v441
      %v443 = vpop.f32.mrb[0].mxu0
      %v444 = vpop.f32.mrb[0].mxu0
      %v445 = vadd.f32 %v349, %v444
      %v446 = vpop.f32.mrb[0].mxu0
      %447 = vdwg.mxu0
      %448 = vst [vmem:[%s226] sm:$0xff] %v434
      %449 = vst [vmem:[%s226 + $0x8] sm:$0xff] %v437
      %450 = vst [vmem:[%s226 + $0x10] sm:$0xff] %v442
      %451 = vst [vmem:[%s226 + $0x18] sm:$0xff] %v445
      %s452 = smul.u32 4, %s16
      %p453 = scmp.lt.s32.totalorder %s452, 7
      %s454 = scalar_select %p453, %s452, 7
      %s455 = smul.addr %s454, 8
      %s456 = scalar_lea.vmem %s5, %s455
      // Predicated region
      $region41: #{policy_network_forward.1} parent=39 // pred_check
        %p457 = pneg %p144
      $region42: #{policy_network_forward.1} parent=39 // pred_check_branch
        %459 = sbr.rel (%p457) target = $region44
      $region43: #{policy_network_forward.1} parent=39 // pred_region
        %s460 = smul.u32 4, %s16
      $region44: #{policy_network_forward.1} parent=39 // pred_fallthru
        _
    $region40: #{policy_network_forward.1} parent=5 // pred_fallthru
      _
    %p461 = scmp.le.s32.totalorder 2, %s11
    // Predicated region
    $region45: #{policy_network_forward.1} parent=5 // pred_check
      %p462 = pneg %p461
    $region46: #{policy_network_forward.1} parent=5 // pred_check_branch
      %464 = sbr.rel (%p462) target = $region48
    $region47: #{policy_network_forward.1} parent=5 // pred_region
      %s465 = ssub.s32 %s11, 2
      // Predicated region
      $region49: #{policy_network_forward.1} parent=47 // pred_check
        %p466 = pneg %p150
      $region50: #{policy_network_forward.1} parent=47 // pred_check_branch
        %468 = sbr.rel (%p466) target = $region52
      $region51: #{policy_network_forward.1} parent=47 // pred_region
        %s469 = smul.u32 4, %s17
        %p470 = scmp.lt.s32.totalorder %s469, 7
        %s471 = scalar_select %p470, %s469, 7
        %s472 = smul.addr %s471, 8
        %s473 = scalar_lea.vmem %s5, %s472
      $region52: #{policy_network_forward.1} parent=47 // pred_fallthru
        _
    $region48: #{policy_network_forward.1} parent=5 // pred_fallthru
      _
  $region6: #{policy_network_forward.1} parent=0 // loop_footer
    %s15 = sadd.s32 1, %s11
  $region7: #{policy_network_forward.1} parent=0 // loop_footer_branch
    %10 = sbr.rel target = $region3
  $region8: #{policy_network_forward.1} parent=0 // loop_exit
    _

</llo_original>
